<compile_context>
chip_gen: v7x
topology: tpu7x:2x2x1
jax: 0.10.0
libtpu: 0.0.40
codegen_flags: <defaults>
</compile_context>

<pallas_src>
import jax
import jax.numpy as jnp
from jax.experimental import pallas as pl
from jax.experimental.pallas import tpu as pltpu


def _edge_mlp_kernel(hcat_ref, w1_ref, b1_ref, w2_ref, b2_ref, o_ref):
    # Hidden layer: one K = 2*h_feats matmul, bf16 operands, f32 accumulation.
    z = (jnp.dot(hcat_ref[...], w1_ref[...],
                 preferred_element_type=jnp.float32)
         + b1_ref[...])                                  # MXU + VPU
    hidden = jnp.maximum(z, 0.0)                         # ReLU (VPU, f32)
    # Output layer as a trans_b matmul: (1, H) x (TILE, H)^T -> (1, TILE).
    # Produces the score vector lane-dense so the store is unmasked/contiguous.
    score = jax.lax.dot_general(
        w2_ref[...], hidden,
        dimension_numbers=(((1,), (1,)), ((), ())),
        preferred_element_type=jnp.float32)
    o_ref[...] = (score + b2_ref[0]).astype(o_ref.dtype)


def mlp_predictor_forward(h, src, dst, params, *, edge_tile=1024):
    """score[e] = W2(relu(W1(concat(h[src[e]], h[dst[e]])))) for every edge."""
    d = h.shape[1]
    w1 = params["w1"]                    # [2*d, hdim]
    b1 = params["b1"]                    # [hdim]
    w2 = params["w2"]                    # [hdim, 1]
    b2 = params["b2"]                    # [1]
    hdim = w1.shape[1]
    e = src.shape[0]

    # Tile selection: big tiles amortize the fixed per-grid-step overhead, but
    # keep >= ~8 grid steps for large E so both v7x TensorCores get work.
    edge_tile = int(min(edge_tile, max(128, pl.next_power_of_2(pl.cdiv(e, 8)))))
    n_tiles = pl.cdiv(e, edge_tile)
    e_pad = n_tiles * edge_tile

    # Pad the cheap int32 index vectors, not the gathered feature rows.
    if e_pad != e:
        src = jnp.pad(src, (0, e_pad - e))
        dst = jnp.pad(dst, (0, e_pad - e))

    # bf16 halves the dominant HBM stream; accumulation stays f32 in-kernel.
    h_b = h.astype(jnp.bfloat16)
    # Endpoint gather + concat (memory op, left to XLA -> one [E_pad, 2d] bf16
    # slab that the kernel streams tile by tile).
    h_cat = jnp.concatenate(
        [jnp.take(h_b, src, axis=0), jnp.take(h_b, dst, axis=0)], axis=1)

    w1_b = w1.astype(jnp.bfloat16)                       # [2d, hdim]
    b1_2d = b1.reshape(1, hdim).astype(jnp.float32)      # [1, hdim]
    w2_row = w2.reshape(1, hdim).astype(jnp.float32)     # [1, hdim]
    b2_1d = b2.reshape(1).astype(jnp.float32)            # [1] (SMEM scalar)

    out = pl.pallas_call(
        _edge_mlp_kernel,
        out_shape=jax.ShapeDtypeStruct((1, e_pad), jnp.float32),
        grid=(n_tiles,),
        in_specs=[
            pl.BlockSpec((edge_tile, 2 * d), lambda i: (i, 0)),  # [h_src|h_dst]
            pl.BlockSpec((2 * d, hdim), lambda i: (0, 0)),       # W1 (resident)
            pl.BlockSpec((1, hdim), lambda i: (0, 0)),           # b1 (resident)
            pl.BlockSpec((1, hdim), lambda i: (0, 0)),           # w2 row
            pl.BlockSpec(memory_space=pltpu.SMEM),               # b2 scalar
        ],
        out_specs=pl.BlockSpec((1, edge_tile), lambda i: (0, i)),
        compiler_params=pltpu.CompilerParams(
            dimension_semantics=("parallel",)),
    )(h_cat, w1_b, b1_2d, w2_row, b2_1d)

    return out[0, :e]                    # .squeeze(1) and drop edge padding


def _init_linear(key, f_in, f_out):
    # nn.Linear default init: U(-1/sqrt(fan_in), 1/sqrt(fan_in)) for W and b.
    kw, kb = jax.random.split(key)
    k = 1.0 / jnp.sqrt(jnp.float32(f_in))
    w = jax.random.uniform(kw, (f_in, f_out), jnp.float32, -k, k)
    b = jax.random.uniform(kb, (f_out,), jnp.float32, -k, k)
    return w, b


if __name__ == "__main__":
    H_FEATS = 128          # h_feats (node embedding dim fed to the predictor)
    N_NODES = 256          # small graph
    N_EDGES = 500          # not a multiple of the tile -> exercises index padding

    key = jax.random.PRNGKey(0)
    k_h, k_src, k_dst, k_w1, k_w2 = jax.random.split(key, 5)

    # Deterministic node features and random edge list (src, dst).
    h = jax.random.normal(k_h, (N_NODES, H_FEATS), jnp.float32)
    src = jax.random.randint(k_src, (N_EDGES,), 0, N_NODES, jnp.int32)
    dst = jax.random.randint(k_dst, (N_EDGES,), 0, N_NODES, jnp.int32)

    # Parameters (shapes from __init__: W1: 2*h_feats -> h_feats, W2: h_feats -> 1).
    params = {}
    params["w1"], params["b1"] = _init_linear(k_w1, 2 * H_FEATS, H_FEATS)
    params["w2"], params["b2"] = _init_linear(k_w2, H_FEATS, 1)

    scores = jax.jit(mlp_predictor_forward)(h, src, dst, params)
    scores = jax.block_until_ready(scores)

    assert scores.shape == (N_EDGES,), scores.shape
    assert bool(jnp.all(jnp.isfinite(scores)))

    # Plain-JAX f32 reference (same math, explicit concat).
    h_cat = jnp.concatenate([h[src], h[dst]], axis=1)
    ref = (jnp.maximum(h_cat @ params["w1"] + params["b1"], 0.0)
           @ params["w2"] + params["b2"])[:, 0]
    assert bool(jnp.allclose(scores, ref, atol=2e-2, rtol=2e-2))

    print("KERNEL_OK")
</pallas_src>

<mosaic_0001>
module attributes {stable_mosaic.version = 11 : i64} {
  func.func @_edge_mlp_kernel(%arg0: i32, %arg1: memref<128x256xbf16, #tpu.memory_space<vmem>>, %arg2: memref<256x128xbf16, #tpu.memory_space<vmem>>, %arg3: memref<1x128xf32, #tpu.memory_space<vmem>>, %arg4: memref<1x128xf32, #tpu.memory_space<vmem>>, %arg5: memref<1xf32, #tpu.memory_space<smem>>, %arg6: memref<1x128xf32, #tpu.memory_space<vmem>>) attributes {dimension_semantics = [#tpu.dimension_semantics<parallel>], iteration_bounds = array<i64: 4>, scalar_prefetch = 0 : i64, scratch_operands = 0 : i64, tpu.core_type = #tpu.core_type<tc>, window_params = [{transform_indices = @transform_0, window_bounds = array<i64: 128, 256>}, {pipeline_mode = #tpu.pipeline_mode<synchronous>, transform_indices = @transform_1, window_bounds = array<i64: 256, 128>}, {pipeline_mode = #tpu.pipeline_mode<synchronous>, transform_indices = @transform_2, window_bounds = array<i64: 1, 128>}, {pipeline_mode = #tpu.pipeline_mode<synchronous>, transform_indices = @transform_3, window_bounds = array<i64: 1, 128>}, {transform_indices = @transform_4, window_bounds = array<i64: 1>}, {transform_indices = @transform_5, window_bounds = array<i64: 1, 128>}]} {
    %c0 = arith.constant 0 : index
    %c0_0 = arith.constant 0 : index
    %0 = vector.load %arg1[%c0, %c0_0] : memref<128x256xbf16, #tpu.memory_space<vmem>>, vector<128x256xbf16>
    %c0_1 = arith.constant 0 : index
    %c0_2 = arith.constant 0 : index
    %1 = vector.load %arg2[%c0_1, %c0_2] : memref<256x128xbf16, #tpu.memory_space<vmem>>, vector<256x128xbf16>
    %cst = arith.constant dense<0.000000e+00> : vector<128x128xf32>
    %2 = tpu.matmul %0, %1, %cst {dimension_numbers = #tpu.dot_dimension_numbers<[1], [0], [0], [1], [0, 0, 1, 1], [], []>} : vector<128x256xbf16>, vector<256x128xbf16>, vector<128x128xf32> -> vector<128x128xf32>
    %c0_3 = arith.constant 0 : index
    %c0_4 = arith.constant 0 : index
    %3 = vector.load %arg3[%c0_3, %c0_4] : memref<1x128xf32, #tpu.memory_space<vmem>>, vector<1x128xf32>
    %4 = vector.broadcast %3 : vector<1x128xf32> to vector<128x128xf32>
    %5 = arith.addf %2, %4 : vector<128x128xf32>
    %cst_5 = arith.constant 0.000000e+00 : f32
    %6 = vector.broadcast %cst_5 : f32 to vector<128x128xf32>
    %7 = arith.maximumf %5, %6 : vector<128x128xf32>
    %c0_6 = arith.constant 0 : index
    %c0_7 = arith.constant 0 : index
    %8 = vector.load %arg4[%c0_6, %c0_7] : memref<1x128xf32, #tpu.memory_space<vmem>>, vector<1x128xf32>
    %cst_8 = arith.constant dense<0.000000e+00> : vector<1x128xf32>
    %9 = tpu.matmul %8, %7, %cst_8 {dimension_numbers = #tpu.dot_dimension_numbers<[1], [1], [0], [0], [0, 0, 1, 0], [], []>} : vector<1x128xf32>, vector<128x128xf32>, vector<1x128xf32> -> vector<1x128xf32>
    %c0_9 = arith.constant 0 : index
    %10 = memref.load %arg5[%c0_9] : memref<1xf32, #tpu.memory_space<smem>>
    %11 = vector.broadcast %10 : f32 to vector<1x128xf32>
    %12 = arith.addf %9, %11 : vector<1x128xf32>
    %c0_10 = arith.constant 0 : index
    %c0_11 = arith.constant 0 : index
    %13 = vector.load %arg6[%c0_10, %c0_11] : memref<1x128xf32, #tpu.memory_space<vmem>>, vector<1x128xf32>
    tpu.vector_store %arg6[%c0_10, %c0_11], %12 {strides = array<i32>} : memref<1x128xf32, #tpu.memory_space<vmem>>, vector<1x128xf32>,
    return
  }
  func.func @transform_0(%arg0: i32) -> (i32, i32) {
    %c0_i32 = arith.constant 0 : i32
    %c0_i32_0 = arith.constant 0 : i32
    return %arg0, %c0_i32 : i32, i32
  }
  func.func @transform_1(%arg0: i32) -> (i32, i32) {
    %c0_i32 = arith.constant 0 : i32
    %c0_i32_0 = arith.constant 0 : i32
    %c0_i32_1 = arith.constant 0 : i32
    return %c0_i32, %c0_i32_0 : i32, i32
  }
  func.func @transform_2(%arg0: i32) -> (i32, i32) {
    %c0_i32 = arith.constant 0 : i32
    %c0_i32_0 = arith.constant 0 : i32
    %c0_i32_1 = arith.constant 0 : i32
    return %c0_i32, %c0_i32_0 : i32, i32
  }
  func.func @transform_3(%arg0: i32) -> (i32, i32) {
    %c0_i32 = arith.constant 0 : i32
    %c0_i32_0 = arith.constant 0 : i32
    %c0_i32_1 = arith.constant 0 : i32
    return %c0_i32, %c0_i32_0 : i32, i32
  }
  func.func @transform_4(%arg0: i32) -> i32 {
    %c0_i32 = arith.constant 0 : i32
    %c0_i32_0 = arith.constant 0 : i32
    return %c0_i32 : i32
  }
  func.func @transform_5(%arg0: i32) -> (i32, i32) {
    %c0_i32 = arith.constant 0 : i32
    %c0_i32_0 = arith.constant 0 : i32
    return %c0_i32, %arg0 : i32, i32
  }
}

</mosaic_0001>

<llo_original>
// kernel: mlp_predictor_forward.1
$region0: #{mlp_predictor_forward.1}
  #allocation0 [shape = 'u32[]', space=smem, size = 0x4, offset = 0x4, fixed_abs, tag = 'smem constant byte address 0x4 - core index']
  #allocation1 [shape = 'u32[144,128]{1,0:T(1,128)}', space=vmem, size = 0x12000, scoped, tag = 'internal scratch']
  #allocation2 [shape = 'f32[1]{0:T(128)S(6)}', space=smem, size = 0x200, scoped, tag = 'scoped memory for mlp_predictor_forward.1']
  %s0 = inlined_call_operand.vmem [shape: bf16[512,256], index: 0, kind: input, shape index: {}]
  %s1 = inlined_call_operand.vmem [shape: bf16[256,128], index: 1, kind: input, shape index: {}]
  %s2 = inlined_call_operand.vmem [shape: f32[1,128], index: 2, kind: input, shape index: {}]
  %s3 = inlined_call_operand.vmem [shape: f32[1,128], index: 3, kind: input, shape index: {}]
  %s4 = inlined_call_operand.<no memory space> [shape: f32[1], index: 4, kind: input, shape index: {}]
  %s5 = inlined_call_operand.hbm [shape: f32[1,512], index: 5, kind: output, shape index: {}]
  %s6 = sld [smem:[#allocation0]]
  $region53: #{mlp_predictor_forward.1} parent=0
    _
  %s8 = ssub.s32 1, %s6
  %s9 = scalar_select 0, %s8, %s6
  %10 = sst [smem:[#allocation2]] %s4
  $region1: #{mlp_predictor_forward.1} parent=0
    #allocation3 [shape = 'u8[1024]{0}', space=vmem, size = 0x400, scoped, tag = 'output window, operand 0']
    #allocation4 [shape = 's32[2]{0}', space=sflag, size = 0x8, scoped, tag = 'scoped memory for mlp_predictor_forward.1']
    %11 = vsyncpa [#allocation4], 0
    %s12 = scalar_lea.sflag [#allocation4], 1
    %13 = vsyncpa %s12, 0
    loop: start=0, step=1, limit=6
    $region2: #{mlp_predictor_forward.1} parent=1 // loop_pre_header
      _
    $region3: #{mlp_predictor_forward.1} parent=1 // loop_header
      %s15 = sphi 0, %s19
      %p16 = scmp.ge.s32.totalorder %s15, 6
      %s25 = sphi 0, %s27
      %s28 = sphi 0, %s25
      %s29 = sphi 0, %s28
      %s45 = sphi 0, %s29
      %s49 = sphi 0, %s49
      %s51 = sphi 0, %s49
      %s52 = sphi 0, %s51
      %s66 = sphi 0, %s52
      %s70 = sphi 0, %s70
      %s72 = sphi 0, %s70
      %s73 = sphi 0, %s72
      %s87 = sphi 0, %s73
      %s91 = sphi 0, %s91
      %s93 = sphi 0, %s91
      %s94 = sphi 0, %s93
      %s108 = sphi 0, %s94
      %s112 = sphi 0, %s112
      %s114 = sphi 0, %s112
      %s115 = sphi 0, %s114
      %s129 = sphi 0, %s115
      %s135 = sphi 0, %s137
      %s138 = sphi 0, %s135
      %s139 = sphi 0, %s138
      %s155 = sphi 0, %s139
    $region4: #{mlp_predictor_forward.1} parent=1 // loop_header_branch
      %18 = sbr.rel (%p16) target = $region8
    $region5: #{mlp_predictor_forward.1} parent=1 // loop_body
      %s20 = ssub.s32 %s15, 1
      %s21 = ssub.s32 %s15, 2
      %s22 = sadd.s32 %s15, 1
      %s23 = ssub.s32 %s15, %s22
      %p24 = scmp.eq.s32.totalorder %s23, 0
      %s26 = sadd.s32 %s25, 1
      %s27 = scalar_select %p24, %s25, %s26
      %p30 = pneg %p24
      %p31 = scmp.eq.s32.totalorder %s15, 3
      %p32 = por %p30, %p31
      %p33 = scmp.ne.s32.totalorder %s25, %s28
      %p34 = scmp.eq.s32.totalorder %s15, 0
      %p35 = por %p33, %p34
      %p36 = scmp.ne.s32.totalorder %s25, %s28
      %p37 = scmp.eq.s32.totalorder %s20, 3
      %p38 = por %p36, %p37
      %p39 = scmp.ne.s32.totalorder %s28, %s29
      %p40 = scmp.eq.s32.totalorder %s20, 0
      %p41 = por %p39, %p40
      %p42 = scmp.ne.s32.totalorder %s28, %s29
      %p43 = scmp.eq.s32.totalorder %s21, 3
      %p44 = por %p42, %p43
      %p46 = scmp.ne.s32.totalorder %s29, %s45
      %p47 = scmp.eq.s32.totalorder %s21, 0
      %p48 = por %p46, %p47
      %s50 = sadd.s32 %s49, 1
      %p53 = scmp.eq.s32.totalorder %s15, 3
      %p54 = scmp.ne.s32.totalorder %s49, %s51
      %p55 = scmp.eq.s32.totalorder %s15, 0
      %p56 = por %p54, %p55
      %p57 = scmp.ne.s32.totalorder %s49, %s51
      %p58 = scmp.eq.s32.totalorder %s20, 3
      %p59 = por %p57, %p58
      %p60 = scmp.ne.s32.totalorder %s51, %s52
      %p61 = scmp.eq.s32.totalorder %s20, 0
      %p62 = por %p60, %p61
      %p63 = scmp.ne.s32.totalorder %s51, %s52
      %p64 = scmp.eq.s32.totalorder %s21, 3
      %p65 = por %p63, %p64
      %p67 = scmp.ne.s32.totalorder %s52, %s66
      %p68 = scmp.eq.s32.totalorder %s21, 0
      %p69 = por %p67, %p68
      %s71 = sadd.s32 %s70, 1
      %p74 = scmp.eq.s32.totalorder %s15, 3
      %p75 = scmp.ne.s32.totalorder %s70, %s72
      %p76 = scmp.eq.s32.totalorder %s15, 0
      %p77 = por %p75, %p76
      %p78 = scmp.ne.s32.totalorder %s70, %s72
      %p79 = scmp.eq.s32.totalorder %s20, 3
      %p80 = por %p78, %p79
      %p81 = scmp.ne.s32.totalorder %s72, %s73
      %p82 = scmp.eq.s32.totalorder %s20, 0
      %p83 = por %p81, %p82
      %p84 = scmp.ne.s32.totalorder %s72, %s73
      %p85 = scmp.eq.s32.totalorder %s21, 3
      %p86 = por %p84, %p85
      %p88 = scmp.ne.s32.totalorder %s73, %s87
      %p89 = scmp.eq.s32.totalorder %s21, 0
      %p90 = por %p88, %p89
      %s92 = sadd.s32 %s91, 1
      %p95 = scmp.eq.s32.totalorder %s15, 3
      %p96 = scmp.ne.s32.totalorder %s91, %s93
      %p97 = scmp.eq.s32.totalorder %s15, 0
      %p98 = por %p96, %p97
      %p99 = scmp.ne.s32.totalorder %s91, %s93
      %p100 = scmp.eq.s32.totalorder %s20, 3
      %p101 = por %p99, %p100
      %p102 = scmp.ne.s32.totalorder %s93, %s94
      %p103 = scmp.eq.s32.totalorder %s20, 0
      %p104 = por %p102, %p103
      %p105 = scmp.ne.s32.totalorder %s93, %s94
      %p106 = scmp.eq.s32.totalorder %s21, 3
      %p107 = por %p105, %p106
      %p109 = scmp.ne.s32.totalorder %s94, %s108
      %p110 = scmp.eq.s32.totalorder %s21, 0
      %p111 = por %p109, %p110
      %s113 = sadd.s32 %s112, 1
      %p116 = scmp.eq.s32.totalorder %s15, 3
      %p117 = scmp.ne.s32.totalorder %s112, %s114
      %p118 = scmp.eq.s32.totalorder %s15, 0
      %p119 = por %p117, %p118
      %p120 = scmp.ne.s32.totalorder %s112, %s114
      %p121 = scmp.eq.s32.totalorder %s20, 3
      %p122 = por %p120, %p121
      %p123 = scmp.ne.s32.totalorder %s114, %s115
      %p124 = scmp.eq.s32.totalorder %s20, 0
      %p125 = por %p123, %p124
      %p126 = scmp.ne.s32.totalorder %s114, %s115
      %p127 = scmp.eq.s32.totalorder %s21, 3
      %p128 = por %p126, %p127
      %p130 = scmp.ne.s32.totalorder %s115, %s129
      %p131 = scmp.eq.s32.totalorder %s21, 0
      %p132 = por %p130, %p131
      %s133 = ssub.s32 %s15, %s22
      %p134 = scmp.eq.s32.totalorder %s133, 0
      %s136 = sadd.s32 %s135, 1
      %s137 = scalar_select %p134, %s135, %s136
      %p140 = pneg %p134
      %p141 = scmp.eq.s32.totalorder %s15, 3
      %p142 = por %p140, %p141
      %p143 = scmp.ne.s32.totalorder %s135, %s138
      %p144 = scmp.eq.s32.totalorder %s15, 0
      %p145 = por %p143, %p144
      %p146 = scmp.ne.s32.totalorder %s135, %s138
      %p147 = scmp.eq.s32.totalorder %s20, 3
      %p148 = por %p146, %p147
      %p149 = scmp.ne.s32.totalorder %s138, %s139
      %p150 = scmp.eq.s32.totalorder %s20, 0
      %p151 = por %p149, %p150
      %p152 = scmp.ne.s32.totalorder %s138, %s139
      %p153 = scmp.eq.s32.totalorder %s21, 3
      %p154 = por %p152, %p153
      %p156 = scmp.ne.s32.totalorder %s139, %s155
      %p157 = scmp.eq.s32.totalorder %s21, 0
      %p158 = por %p156, %p157
      %p159 = scmp.le.s32.totalorder 1, %s15
      %p160 = scmp.lt.s32.totalorder %s15, 5
      %p161 = pnand %p159, %p160
      %p162 = pneg %p161
      // Predicated region
      $region9: #{mlp_predictor_forward.1} parent=5 // pred_check
        _
      $region10: #{mlp_predictor_forward.1} parent=5 // pred_check_branch
        %164 = sbr.rel (%p161) target = $region12
      $region11: #{mlp_predictor_forward.1} parent=5 // pred_region
        %s165 = ssub.s32 %s15, 1
        // Predicated region
        $region13: #{mlp_predictor_forward.1} parent=11 // pred_check
          %p166 = pneg %p62
        $region14: #{mlp_predictor_forward.1} parent=11 // pred_check_branch
          %168 = sbr.rel (%p166) target = $region16
        $region15: #{mlp_predictor_forward.1} parent=11 // pred_region
          _
        $region16: #{mlp_predictor_forward.1} parent=11 // pred_fallthru
          _
        // Predicated region
        $region17: #{mlp_predictor_forward.1} parent=11 // pred_check
          %p169 = pneg %p83
        $region18: #{mlp_predictor_forward.1} parent=11 // pred_check_branch
          %171 = sbr.rel (%p169) target = $region20
        $region19: #{mlp_predictor_forward.1} parent=11 // pred_region
          _
        $region20: #{mlp_predictor_forward.1} parent=11 // pred_fallthru
          _
        // Predicated region
        $region21: #{mlp_predictor_forward.1} parent=11 // pred_check
          %p172 = pneg %p104
        $region22: #{mlp_predictor_forward.1} parent=11 // pred_check_branch
          %174 = sbr.rel (%p172) target = $region24
        $region23: #{mlp_predictor_forward.1} parent=11 // pred_region
          _
        $region24: #{mlp_predictor_forward.1} parent=11 // pred_fallthru
          _
        // Predicated region
        $region25: #{mlp_predictor_forward.1} parent=11 // pred_check
          %p175 = pneg %p125
        $region26: #{mlp_predictor_forward.1} parent=11 // pred_check_branch
          %177 = sbr.rel (%p175) target = $region28
        $region27: #{mlp_predictor_forward.1} parent=11 // pred_region
          _
        $region28: #{mlp_predictor_forward.1} parent=11 // pred_fallthru
          _
      $region12: #{mlp_predictor_forward.1} parent=5 // pred_fallthru
        _
      %p178 = scmp.lt.s32.totalorder %s15, 4
      // Predicated region
      $region29: #{mlp_predictor_forward.1} parent=5 // pred_check
        %p179 = pneg %p178
      $region30: #{mlp_predictor_forward.1} parent=5 // pred_check_branch
        %181 = sbr.rel (%p179) target = $region32
      $region31: #{mlp_predictor_forward.1} parent=5 // pred_region
        // Predicated region
        $region33: #{mlp_predictor_forward.1} parent=31 // pred_check
          %p182 = pneg %p35
        $region34: #{mlp_predictor_forward.1} parent=31 // pred_check_branch
          %184 = sbr.rel (%p182) target = $region36
        $region35: #{mlp_predictor_forward.1} parent=31 // pred_region
          %s185 = smul.u32 16, %s15
          %p186 = scmp.lt.s32.totalorder %s185, 63
          %s187 = scalar_select %p186, %s185, 63
          %s188 = smul.addr %s187, 2
          %s189 = smul.addr %s188, 4
          %s190 = scalar_lea.vmem %s0, %s189
          %s191 = smul.u32 16, %s15
        $region36: #{mlp_predictor_forward.1} parent=31 // pred_fallthru
          _
      $region32: #{mlp_predictor_forward.1} parent=5 // pred_fallthru
        _
      %p192 = scmp.le.s32.totalorder 1, %s15
      %p193 = scmp.lt.s32.totalorder %s15, 5
      %p194 = pnand %p192, %p193
      %p195 = pneg %p194
      // Predicated region
      $region37: #{mlp_predictor_forward.1} parent=5 // pred_check
        _
      $region38: #{mlp_predictor_forward.1} parent=5 // pred_check_branch
        %197 = sbr.rel (%p194) target = $region40
      $region39: #{mlp_predictor_forward.1} parent=5 // pred_region
        %s198 = ssub.s32 %s15, 1
        %s199 = smul.u32 16, %s20
        %p200 = scmp.lt.s32.totalorder %s199, 63
        %s201 = scalar_select %p200, %s199, 63
        %s202 = smul.addr %s201, 2
        %s203 = smul.addr %s202, 4
        %s204 = scalar_lea.vmem %s0, %s203
        %p205 = pneg %p41
        %p206 = pneg %p38
        %p207 = pneg %p62
        %p208 = pneg %p59
        %p209 = pneg %p83
        %p210 = pneg %p80
        %p211 = pneg %p104
        %p212 = pneg %p101
        %p213 = pneg %p125
        %p214 = pneg %p122
        %p215 = pneg %p151
        %p216 = pneg %p148
        %s217 = sand.u32 %s138, 1
        %s218 = scalar_lea.sflag [#allocation4], %s217
        %s219 = sand.u32 %s138, 1
        %s220 = scalar_lea.vmem [#allocation3], %s219
        %s221 = smul.u32 16, %s20
        %p222 = scmp.lt.s32.totalorder %s221, 63
        %s223 = scalar_select %p222, %s221, 63
        %s224 = smul.addr %s223, 2
        %s225 = smul.addr %s224, 4
        %s226 = scalar_lea.vmem %s0, %s225
        %s227 = smul.u32 16, %s20
        %v229 = vld [vmem:[%s226] sm:$0xff]
        %v230 = vld [vmem:[%s226 + $0x8] sm:$0xff]
        %v231 = vld [vmem:[%s226 + $0x10] sm:$0xff]
        %v232 = vld [vmem:[%s226 + $0x18] sm:$0xff]
        %v233 = vld [vmem:[%s226 + $0x20] sm:$0xff]
        %v234 = vld [vmem:[%s226 + $0x28] sm:$0xff]
        %v235 = vld [vmem:[%s226 + $0x30] sm:$0xff]
        %v236 = vld [vmem:[%s226 + $0x38] sm:$0xff]
        %v237 = vld [vmem:[%s226 + $0x40] sm:$0xff]
        %v238 = vld [vmem:[%s226 + $0x48] sm:$0xff]
        %v239 = vld [vmem:[%s226 + $0x50] sm:$0xff]
        %v240 = vld [vmem:[%s226 + $0x58] sm:$0xff]
        %v241 = vld [vmem:[%s226 + $0x60] sm:$0xff]
        %v242 = vld [vmem:[%s226 + $0x68] sm:$0xff]
        %v243 = vld [vmem:[%s226 + $0x70] sm:$0xff]
        %v244 = vld [vmem:[%s226 + $0x78] sm:$0xff]
        %v245 = vld [vmem:[%s1] sm:$0xf]
        %v246 = vld [vmem:[%s1 + $0x4] sm:$0xf]
        %v247 = vld [vmem:[%s1 + $0x8] sm:$0xf]
        %v248 = vld [vmem:[%s1 + $0xc] sm:$0xf]
        %v249 = vld [vmem:[%s1 + $0x10] sm:$0xf]
        %v250 = vld [vmem:[%s1 + $0x14] sm:$0xf]
        %v251 = vld [vmem:[%s1 + $0x18] sm:$0xf]
        %v252 = vld [vmem:[%s1 + $0x1c] sm:$0xf]
        %v253 = vld [vmem:[%s1 + $0x20] sm:$0xf]
        %v254 = vld [vmem:[%s1 + $0x24] sm:$0xf]
        %v255 = vld [vmem:[%s1 + $0x28] sm:$0xf]
        %v256 = vld [vmem:[%s1 + $0x2c] sm:$0xf]
        %v257 = vld [vmem:[%s1 + $0x30] sm:$0xf]
        %v258 = vld [vmem:[%s1 + $0x34] sm:$0xf]
        %v259 = vld [vmem:[%s1 + $0x38] sm:$0xf]
        %v260 = vld [vmem:[%s1 + $0x3c] sm:$0xf]
        %v261 = vld [vmem:[%s1 + $0x40] sm:$0xf]
        %v262 = vld [vmem:[%s1 + $0x44] sm:$0xf]
        %v263 = vld [vmem:[%s1 + $0x48] sm:$0xf]
        %v264 = vld [vmem:[%s1 + $0x4c] sm:$0xf]
        %v265 = vld [vmem:[%s1 + $0x50] sm:$0xf]
        %v266 = vld [vmem:[%s1 + $0x54] sm:$0xf]
        %v267 = vld [vmem:[%s1 + $0x58] sm:$0xf]
        %v268 = vld [vmem:[%s1 + $0x5c] sm:$0xf]
        %v269 = vld [vmem:[%s1 + $0x60] sm:$0xf]
        %v270 = vld [vmem:[%s1 + $0x64] sm:$0xf]
        %v271 = vld [vmem:[%s1 + $0x68] sm:$0xf]
        %v272 = vld [vmem:[%s1 + $0x6c] sm:$0xf]
        %v273 = vld [vmem:[%s1 + $0x70] sm:$0xf]
        %v274 = vld [vmem:[%s1 + $0x74] sm:$0xf]
        %v275 = vld [vmem:[%s1 + $0x78] sm:$0xf]
        %v276 = vld [vmem:[%s1 + $0x7c] sm:$0xf]
        %v277 = vld [vmem:[%s2] sm:$0x1]
        %v279 = vlaneseq
        %v280 = vshrl.u32 %v279, 7
        %v281 = vsub.s32 0, %v280
        %v282 = vrot.slane %v277, %v281
        %v300 = vunpack.c.l.b16 %v229
        %v301 = vunpack.c.h.b16 %v229
        %v302 = vunpack.c.l.b16 %v230
        %v303 = vunpack.c.h.b16 %v230
        %v304 = vunpack.c.l.b16 %v231
        %v305 = vunpack.c.h.b16 %v231
        %v306 = vunpack.c.l.b16 %v232
        %v307 = vunpack.c.h.b16 %v232
        %v308 = vunpack.c.l.b16 %v233
        %v309 = vunpack.c.h.b16 %v233
        %v310 = vunpack.c.l.b16 %v234
        %v311 = vunpack.c.h.b16 %v234
        %v312 = vunpack.c.l.b16 %v235
        %v313 = vunpack.c.h.b16 %v235
        %v314 = vunpack.c.l.b16 %v236
        %v315 = vunpack.c.h.b16 %v236
        %v316 = vunpack.c.l.b16 %v237
        %v317 = vunpack.c.h.b16 %v237
        %v318 = vunpack.c.l.b16 %v238
        %v319 = vunpack.c.h.b16 %v238
        %v320 = vunpack.c.l.b16 %v239
        %v321 = vunpack.c.h.b16 %v239
        %v322 = vunpack.c.l.b16 %v240
        %v323 = vunpack.c.h.b16 %v240
        %v324 = vunpack.c.l.b16 %v241
        %v325 = vunpack.c.h.b16 %v241
        %v326 = vunpack.c.l.b16 %v242
        %v327 = vunpack.c.h.b16 %v242
        %v328 = vunpack.c.l.b16 %v243
        %v329 = vunpack.c.h.b16 %v243
        %v330 = vunpack.c.l.b16 %v244
        %v331 = vunpack.c.h.b16 %v244
        %v332 = vpack.c.b16 %v302, %v300
        %v333 = vpack.c.b16 %v303, %v301
        %v334 = vpack.c.b16 %v306, %v304
        %v335 = vpack.c.b16 %v307, %v305
        %v336 = vpack.c.b16 %v310, %v308
        %v337 = vpack.c.b16 %v311, %v309
        %v338 = vpack.c.b16 %v314, %v312
        %v339 = vpack.c.b16 %v315, %v313
        %v340 = vpack.c.b16 %v318, %v316
        %v341 = vpack.c.b16 %v319, %v317
        %v342 = vpack.c.b16 %v322, %v320
        %v343 = vpack.c.b16 %v323, %v321
        %v344 = vpack.c.b16 %v326, %v324
        %v345 = vpack.c.b16 %v327, %v325
        %v346 = vpack.c.b16 %v330, %v328
        %v347 = vpack.c.b16 %v331, %v329
        %v396 = vunpack.c.l.b16 %v245
        %v397 = vunpack.c.l.b16 %v246
        %v398 = vunpack.c.l.b16 %v247
        %v399 = vunpack.c.l.b16 %v248
        %v400 = vunpack.c.l.b16 %v249
        %v401 = vunpack.c.l.b16 %v250
        %v402 = vunpack.c.l.b16 %v251
        %v403 = vunpack.c.l.b16 %v252
        %v404 = vunpack.c.l.b16 %v253
        %v405 = vunpack.c.l.b16 %v254
        %v406 = vunpack.c.l.b16 %v255
        %v407 = vunpack.c.l.b16 %v256
        %v408 = vunpack.c.l.b16 %v257
        %v409 = vunpack.c.l.b16 %v258
        %v410 = vunpack.c.l.b16 %v259
        %v411 = vunpack.c.l.b16 %v260
        %v412 = vunpack.c.l.b16 %v261
        %v413 = vunpack.c.l.b16 %v262
        %v414 = vunpack.c.l.b16 %v263
        %v415 = vunpack.c.l.b16 %v264
        %v416 = vunpack.c.l.b16 %v265
        %v417 = vunpack.c.l.b16 %v266
        %v418 = vunpack.c.l.b16 %v267
        %v419 = vunpack.c.l.b16 %v268
        %v420 = vunpack.c.l.b16 %v269
        %v421 = vunpack.c.l.b16 %v270
        %v422 = vunpack.c.l.b16 %v271
        %v423 = vunpack.c.l.b16 %v272
        %v424 = vunpack.c.l.b16 %v273
        %v425 = vunpack.c.l.b16 %v274
        %v426 = vunpack.c.l.b16 %v275
        %v427 = vunpack.c.l.b16 %v276
        %v428 = vpack.c.b16 %v397, %v396
        %v429 = vpack.c.b16 %v399, %v398
        %v430 = vpack.c.b16 %v401, %v400
        %v431 = vpack.c.b16 %v403, %v402
        %v432 = vpack.c.b16 %v405, %v404
        %v433 = vpack.c.b16 %v407, %v406
        %v434 = vpack.c.b16 %v409, %v408
        %v435 = vpack.c.b16 %v411, %v410
        %v436 = vpack.c.b16 %v413, %v412
        %v437 = vpack.c.b16 %v415, %v414
        %v438 = vpack.c.b16 %v417, %v416
        %v439 = vpack.c.b16 %v419, %v418
        %v440 = vpack.c.b16 %v421, %v420
        %v441 = vpack.c.b16 %v423, %v422
        %v442 = vpack.c.b16 %v425, %v424
        %v443 = vpack.c.b16 %v427, %v426
        %460 = vmatprep.subr.bf16.mxu0 0
        %461 = vmatpush1.bf16.msra.mxu0 %v428
        %462 = vmatprep.subr.bf16.mxu0 0
        %463 = vmatpush1.bf16.msra.mxu0 %v429
        %464 = vmatprep.subr.bf16.mxu0 0
        %465 = vmatpush1.bf16.msra.mxu0 %v430
        %466 = vmatprep.subr.bf16.mxu0 0
        %467 = vmatpush1.bf16.msra.mxu0 %v431
        %468 = vmatprep.subr.bf16.mxu0 0
        %469 = vmatpush1.bf16.msra.mxu0 %v432
        %470 = vmatprep.subr.bf16.mxu0 0
        %471 = vmatpush1.bf16.msra.mxu0 %v433
        %472 = vmatprep.subr.bf16.mxu0 0
        %473 = vmatpush1.bf16.msra.mxu0 %v434
        %474 = vmatprep.subr.bf16.mxu0 0
        %475 = vmatpush1.bf16.msra.mxu0 %v435
        %476 = vmatprep.subr.bf16.mxu0 0
        %477 = vmatpush1.bf16.msra.mxu0 %v436
        %478 = vmatprep.subr.bf16.mxu0 0
        %479 = vmatpush1.bf16.msra.mxu0 %v437
        %480 = vmatprep.subr.bf16.mxu0 0
        %481 = vmatpush1.bf16.msra.mxu0 %v438
        %482 = vmatprep.subr.bf16.mxu0 0
        %483 = vmatpush1.bf16.msra.mxu0 %v439
        %484 = vmatprep.subr.bf16.mxu0 0
        %485 = vmatpush1.bf16.msra.mxu0 %v440
        %486 = vmatprep.subr.bf16.mxu0 0
        %487 = vmatpush1.bf16.msra.mxu0 %v441
        %488 = vmatprep.subr.bf16.mxu0 0
        %489 = vmatpush1.bf16.msra.mxu0 %v442
        %490 = vmatprep.subr.bf16.mxu0 0
        %491 = vmatpush1.bf16.msra.mxu0 %v443
        %492 = vmatprep.mubr.bf16.mxu0 %v333
        %493 = vmatmul.mubr.bf16.gmra.mrb[0].mxu0 %v332
        %v494 = vpop.f32.mrb[0].mxu0
        %v495 = vadd.f32 %v282, %v494
        %v496 = vpop.f32.mrb[0].mxu0
        %v497 = vpop.f32.mrb[0].mxu0
        %v498 = vadd.f32 %v282, %v497
        %v499 = vpop.f32.mrb[0].mxu0
        %500 = vmatprep.mubr.bf16.mxu0 %v335
        %501 = vmatmul.mubr.bf16.gmra.mrb[0].mxu0 %v334
        %v502 = vpop.f32.mrb[0].mxu0
        %v503 = vadd.f32 %v282, %v502
        %v504 = vpop.f32.mrb[0].mxu0
        %v505 = vpop.f32.mrb[0].mxu0
        %v506 = vadd.f32 %v282, %v505
        %v507 = vpop.f32.mrb[0].mxu0
        %508 = vmatprep.mubr.bf16.mxu0 %v337
        %509 = vmatmul.mubr.bf16.gmra.mrb[0].mxu0 %v336
        %v510 = vpop.f32.mrb[0].mxu0
        %v511 = vadd.f32 %v282, %v510
        %v512 = vpop.f32.mrb[0].mxu0
        %v513 = vpop.f32.mrb[0].mxu0
        %v514 = vadd.f32 %v282, %v513
        %v515 = vpop.f32.mrb[0].mxu0
        %516 = vmatprep.mubr.bf16.mxu0 %v339
        %517 = vmatmul.mubr.bf16.gmra.mrb[0].mxu0 %v338
        %v518 = vpop.f32.mrb[0].mxu0
        %v519 = vadd.f32 %v282, %v518
        %v520 = vpop.f32.mrb[0].mxu0
        %v521 = vpop.f32.mrb[0].mxu0
        %v522 = vadd.f32 %v282, %v521
        %v523 = vpop.f32.mrb[0].mxu0
        %524 = vmatprep.mubr.bf16.mxu0 %v341
        %525 = vmatmul.mubr.bf16.gmra.mrb[0].mxu0 %v340
        %v526 = vpop.f32.mrb[0].mxu0
        %v527 = vadd.f32 %v282, %v526
        %v528 = vpop.f32.mrb[0].mxu0
        %v529 = vpop.f32.mrb[0].mxu0
        %v530 = vadd.f32 %v282, %v529
        %v531 = vpop.f32.mrb[0].mxu0
        %532 = vmatprep.mubr.bf16.mxu0 %v343
        %533 = vmatmul.mubr.bf16.gmra.mrb[0].mxu0 %v342
        %v534 = vpop.f32.mrb[0].mxu0
        %v535 = vadd.f32 %v282, %v534
        %v536 = vpop.f32.mrb[0].mxu0
        %v537 = vpop.f32.mrb[0].mxu0
        %v538 = vadd.f32 %v282, %v537
        %v539 = vpop.f32.mrb[0].mxu0
        %540 = vmatprep.mubr.bf16.mxu0 %v345
        %541 = vmatmul.mubr.bf16.gmra.mrb[0].mxu0 %v344
        %v542 = vpop.f32.mrb[0].mxu0
        %v543 = vadd.f32 %v282, %v542
        %v544 = vpop.f32.mrb[0].mxu0
        %v545 = vpop.f32.mrb[0].mxu0
        %v546 = vadd.f32 %v282, %v545
        %v547 = vpop.f32.mrb[0].mxu0
        %548 = vmatprep.mubr.bf16.mxu0 %v347
        %549 = vmatmul.mubr.bf16.gmra.mrb[0].mxu0 %v346
        %v550 = vpop.f32.mrb[0].mxu0
        %v551 = vadd.f32 %v282, %v550
        %v552 = vpop.f32.mrb[0].mxu0
        %v553 = vpop.f32.mrb[0].mxu0
        %v554 = vadd.f32 %v282, %v553
        %v555 = vpop.f32.mrb[0].mxu0
        %556 = vdwg.mxu0
        %v557 = vmax.f32 %v495, 0.0
        %v558 = vmax.f32 %v498, 0.0
        %v559 = vmax.f32 %v503, 0.0
        %v560 = vmax.f32 %v506, 0.0
        %v561 = vmax.f32 %v511, 0.0
        %v562 = vmax.f32 %v514, 0.0
        %v563 = vmax.f32 %v519, 0.0
        %v564 = vmax.f32 %v522, 0.0
        %v565 = vmax.f32 %v527, 0.0
        %v566 = vmax.f32 %v530, 0.0
        %v567 = vmax.f32 %v535, 0.0
        %v568 = vmax.f32 %v538, 0.0
        %v569 = vmax.f32 %v543, 0.0
        %v570 = vmax.f32 %v546, 0.0
        %v571 = vmax.f32 %v551, 0.0
        %v572 = vmax.f32 %v554, 0.0
        %v573 = vld [vmem:[%s3] sm:$0x1]
        %s574 = sld [smem:[#allocation2]]
        %v575 = vstv %s574
        %576 = vmatprep.subr.mxu0 0.0
        %577 = vmatpush1.xpose.msra.mxu0 %v557
        %578 = vmatprep.subr.mxu0 0.0
        %579 = vmatpush1.xpose.msra.mxu0 %v558
        %580 = vmatprep.subr.mxu0 0.0
        %581 = vmatpush1.xpose.msra.mxu0 %v559
        %582 = vmatprep.subr.mxu0 0.0
        %583 = vmatpush1.xpose.msra.mxu0 %v560
        %584 = vmatprep.subr.mxu0 0.0
        %585 = vmatpush1.xpose.msra.mxu0 %v561
        %586 = vmatprep.subr.mxu0 0.0
        %587 = vmatpush1.xpose.msra.mxu0 %v562
        %588 = vmatprep.subr.mxu0 0.0
        %589 = vmatpush1.xpose.msra.mxu0 %v563
        %590 = vmatprep.subr.mxu0 0.0
        %591 = vmatpush1.xpose.msra.mxu0 %v564
        %592 = vmatprep.subr.mxu0 0.0
        %593 = vmatpush1.xpose.msra.mxu0 %v565
        %594 = vmatprep.subr.mxu0 0.0
        %595 = vmatpush1.xpose.msra.mxu0 %v566
        %596 = vmatprep.subr.mxu0 0.0
        %597 = vmatpush1.xpose.msra.mxu0 %v567
        %598 = vmatprep.subr.mxu0 0.0
        %599 = vmatpush1.xpose.msra.mxu0 %v568
        %600 = vmatprep.subr.mxu0 0.0
        %601 = vmatpush1.xpose.msra.mxu0 %v569
        %602 = vmatprep.subr.mxu0 0.0
        %603 = vmatpush1.xpose.msra.mxu0 %v570
        %604 = vmatprep.subr.mxu0 0.0
        %605 = vmatpush1.xpose.msra.mxu0 %v571
        %606 = vmatprep.subr.mxu0 0.0
        %607 = vmatpush1.xpose.msra.mxu0 %v572
        %608 = vmatprep.subr.mxu0 0.0
        %609 = vmatpush1.xpose.msra.mxu0 0.0
        %610 = vmatprep.subr.mxu0 0.0
        %611 = vmatpush1.xpose.msra.mxu0 0.0
        %612 = vmatprep.subr.mxu0 0.0
        %613 = vmatpush1.xpose.msra.mxu0 0.0
        %614 = vmatprep.subr.mxu0 0.0
        %615 = vmatpush1.xpose.msra.mxu0 0.0
        %616 = vmatprep.subr.mxu0 0.0
        %617 = vmatpush1.xpose.msra.mxu0 0.0
        %618 = vmatprep.subr.mxu0 0.0
        %619 = vmatpush1.xpose.msra.mxu0 0.0
        %620 = vmatprep.subr.mxu0 0.0
        %621 = vmatpush1.xpose.msra.mxu0 0.0
        %622 = vmatprep.subr.mxu0 0.0
        %623 = vmatpush1.xpose.msra.mxu0 0.0
        %624 = vmatprep.subr.mxu0 0.0
        %625 = vmatpush1.xpose.msra.mxu0 0.0
        %626 = vmatprep.subr.mxu0 0.0
        %627 = vmatpush1.xpose.msra.mxu0 0.0
        %628 = vmatprep.subr.mxu0 0.0
        %629 = vmatpush1.xpose.msra.mxu0 0.0
        %630 = vmatprep.subr.mxu0 0.0
        %631 = vmatpush1.xpose.msra.mxu0 0.0
        %632 = vmatprep.subr.mxu0 0.0
        %633 = vmatpush1.xpose.msra.mxu0 0.0
        %634 = vmatprep.subr.mxu0 0.0
        %635 = vmatpush1.xpose.msra.mxu0 0.0
        %636 = vmatprep.subr.mxu0 0.0
        %637 = vmatpush1.xpose.msra.mxu0 0.0
        %638 = vmatprep.subr.mxu0 0.0
        %639 = vmatpush1.xpose.msra.mxu0 0.0
        %640 = vmatprep.mubr.f32.mxu0 0.0
        %641 = vmatmul.mubr.f32.gmra.mrb[0].mxu0 %v573
        %v642 = vpop.f32.mrb[0].mxu0
        %v643 = vadd.f32 %v575, %v642
        %v644 = vpop.f32.mrb[0].mxu0
        %645 = vdwg.mxu0
        %646 = vst [vmem:[%s220] sm:$0x1] %v643
        %s647 = sand.u32 %s138, 1
        %s648 = scalar_lea.sflag [#allocation4], %s647
        %s649 = sand.u32 %s138, 1
        %s650 = scalar_lea.vmem [#allocation3], %s649
        // Predicated region
        $region41: #{mlp_predictor_forward.1} parent=39 // pred_check
          %p651 = pneg %p148
        $region42: #{mlp_predictor_forward.1} parent=39 // pred_check_branch
          %653 = sbr.rel (%p651) target = $region44
        $region43: #{mlp_predictor_forward.1} parent=39 // pred_region
          %s655 = ssub.s32 16, 16
          %656 = vsyncadd %s648, %s655
          %s657 = smul.addr %s20, 16
          %s658 = scalar_lea.hbm %s5, %s657
          %s660 = sshll.u32 %s650, 4
          %s661 = int_to_ptr.vmem [resolvable:$true] %s660
          %663 = dma.vmem_to_hbm [thread:$0]  %s661, 16, %s658, %s648
        $region44: #{mlp_predictor_forward.1} parent=39 // pred_fallthru
          _
      $region40: #{mlp_predictor_forward.1} parent=5 // pred_fallthru
        _
      %p664 = scmp.le.s32.totalorder 2, %s15
      // Predicated region
      $region45: #{mlp_predictor_forward.1} parent=5 // pred_check
        %p665 = pneg %p664
      $region46: #{mlp_predictor_forward.1} parent=5 // pred_check_branch
        %667 = sbr.rel (%p665) target = $region48
      $region47: #{mlp_predictor_forward.1} parent=5 // pred_region
        %s668 = ssub.s32 %s15, 2
        // Predicated region
        $region49: #{mlp_predictor_forward.1} parent=47 // pred_check
          %p669 = pneg %p154
        $region50: #{mlp_predictor_forward.1} parent=47 // pred_check_branch
          %671 = sbr.rel (%p669) target = $region52
        $region51: #{mlp_predictor_forward.1} parent=47 // pred_region
          %s672 = sand.u32 %s139, 1
          %s673 = scalar_lea.sflag [#allocation4], %s672
          %s674 = sand.u32 %s139, 1
          %s675 = scalar_lea.vmem [#allocation3], %s674
          %676 = dma.done %s673, 16
        $region52: #{mlp_predictor_forward.1} parent=47 // pred_fallthru
          _
      $region48: #{mlp_predictor_forward.1} parent=5 // pred_fallthru
        _
    $region6: #{mlp_predictor_forward.1} parent=1 // loop_footer
      %s19 = sadd.s32 1, %s15
    $region7: #{mlp_predictor_forward.1} parent=1 // loop_footer_branch
      %14 = sbr.rel target = $region3
    $region8: #{mlp_predictor_forward.1} parent=1 // loop_exit
      _
    %677 = vsyncpa [#allocation4], 1
    %s678 = scalar_lea.sflag [#allocation4], 1
    %679 = vsyncpa %s678, 1

</llo_original>
